<compile_context>
chip_gen: v7x
topology: tpu7x:2x2x1
jax: 0.10.0
libtpu: 0.0.40
codegen_flags: <defaults>
</compile_context>

<pallas_src>
import math

import jax
import jax.numpy as jnp
from jax import lax
from jax.experimental import pallas as pl
from jax.experimental.pallas import tpu as pltpu


# ---------------------------------------------------------------------------
# Kernels
# ---------------------------------------------------------------------------
def _row_terms(x_ref, xopt_ref):
    """Per-row Rosenbrock terms for one (tb, D) batch tile, in f32."""
    z = x_ref[...].astype(jnp.float32) - xopt_ref[...].astype(jnp.float32)
    zh = z[:, :-1]                                              # z[:, :-1]
    zt = z[:, 1:]                                               # z[:, 1:]
    return 100.0 * (zh * zh - zt) ** 2 + (zh - 1.0) ** 2        # (tb, D-1)


def _rosenbrock_lane_kernel(ones_ref, x_ref, xopt_ref, o_ref):
    """Lane-dense output: per-row sums land as a (1, tb) lane slab."""
    term = _row_terms(x_ref, xopt_ref)                          # (tb, D-1)
    # Row-reduce on the otherwise-idle MXU: ones(8, D-1) x term(tb, D-1) contracting
    # the last dims -> (8, tb); row 0 holds the batch-indexed sums along lanes.
    sums = lax.dot_general(
        ones_ref[...], term, (((1,), (1,)), ((), ())),
        preferred_element_type=jnp.float32,
        precision=lax.Precision.HIGHEST,
    )                                                           # (8, tb)
    o_ref[...] = (sums[0:1, :] - 1.0).astype(o_ref.dtype)       # (1, tb)


def _rosenbrock_col_kernel(x_ref, xopt_ref, o_ref):
    """Column output (tb, 1) for the huge-D / sub-128-row-tile regime."""
    term = _row_terms(x_ref, xopt_ref)                          # (tb, D-1)
    o_ref[...] = (jnp.sum(term, axis=1, keepdims=True) - 1.0).astype(o_ref.dtype)


# ---------------------------------------------------------------------------
# Tiling / VMEM budgeting
# ---------------------------------------------------------------------------
_VMEM_TILE_BUDGET = 40 << 20   # live-bytes budget per grid step; safe on v7x (64 MiB
                               # physical) and well within v5e/v6e (128 MiB physical).


def _round_up(v: int, m: int) -> int:
    return ((v + m - 1) // m) * m


def _choose_block_rows(batch: int, dim: int, itemsize: int, n_streamed: int) -> int:
    """Byte-budgeted batch-tile height (rows), VMEM-intermediate aware."""
    # Per batch row of live VMEM: double-buffered streamed inputs + ~4 live f32
    # (row, dim) intermediates (z, zh, zt, term) at peak.
    bytes_per_row = dim * (2 * n_streamed * itemsize + 4 * 4)
    tb_budget = max(8, _VMEM_TILE_BUDGET // max(bytes_per_row, 1))

    streamed_bytes = batch * dim * itemsize * n_streamed
    min_tiles = 2 if streamed_bytes > (2 << 20) else 1   # v7x megacore + pipelining
    n_tiles = max(min_tiles, -(-batch // tb_budget))

    if n_tiles == 1:
        return _round_up(batch, 8)                        # single full tile
    tb = -(-batch // n_tiles)                             # cdiv
    if tb >= 128:
        # Lane-aligned output slabs, but never past the VMEM budget.
        tb = min(_round_up(tb, 128), max(128, (tb_budget // 128) * 128))
    else:
        # Huge-D regime: keep tiles small (column-output kernel handles this).
        tb = max(8, min(_round_up(tb, 8), (tb_budget // 8) * 8))
    return tb


def _vmem_limit_bytes(tb: int, dim: int, itemsize: int, n_streamed: int) -> int:
    est = 2 * n_streamed * tb * dim * itemsize            # double-buffered input tiles
    est += 4 * dim * itemsize                             # resident x_opt (if any)
    est += 2 * 8 * max(dim - 1, 1) * 4                    # resident ones (lane path)
    est += 4 * tb * dim * 4                               # live f32 intermediates
    est += 4 * max(tb, 128) * 4                           # output blocks
    est += 4 << 20                                        # compiler scratch slack
    return int(min(max(est, 32 << 20), 96 << 20))


# ---------------------------------------------------------------------------
# Wrapper
# ---------------------------------------------------------------------------
def rosenbrock_pallas(x, x_opt, *, block_rows=None):
    """x: (B, D); x_opt: (B, D) streamed or (1, D)/(D,) VMEM-resident -> (B, 1) f32."""
    B, D = x.shape
    if x_opt.ndim == 1:
        x_opt = x_opt.reshape(1, -1)
    assert x_opt.shape[-1] == D, (x.shape, x_opt.shape)
    xopt_resident = x_opt.shape[0] == 1 and B != 1
    if not xopt_resident:
        assert x_opt.shape == (B, D), (x.shape, x_opt.shape)

    if D < 2:  # empty Rosenbrock sum -> 0, then the trailing -1.0
        return jnp.full((B, 1), -1.0, dtype=jnp.float32)

    itemsize = x.dtype.itemsize
    n_streamed = 1 if xopt_resident else 2

    if block_rows is not None:
        tb = max(8, _round_up(int(block_rows), 8))
    else:
        tb = _choose_block_rows(B, D, itemsize, n_streamed)
    b_pad = _round_up(B, tb)
    num_tiles = b_pad // tb
    lane_dense = (num_tiles == 1) or (tb % 128 == 0)

    # Pad the batch so every tile is full (padded rows produce finite garbage that is
    # sliced off at the end).
    if b_pad != B:
        x = jnp.pad(x, ((0, b_pad - B), (0, 0)))
        if not xopt_resident:
            x_opt = jnp.pad(x_opt, ((0, b_pad - B), (0, 0)))

    # x_opt BlockSpec: resident (1, D) loaded once, or streamed per batch tile.
    if xopt_resident:
        xopt_spec = pl.BlockSpec((1, D), lambda i: (0, 0))
        xopt_bytes = D * x_opt.dtype.itemsize
    else:
        xopt_spec = pl.BlockSpec((tb, D), lambda i: (i, 0))
        xopt_bytes = b_pad * D * x_opt.dtype.itemsize

    cost = pl.CostEstimate(
        flops=int(9 * b_pad * (D - 1)),
        transcendentals=0,
        bytes_accessed=int(b_pad * D * itemsize + xopt_bytes + 4 * b_pad),
    )
    compiler_params = pltpu.CompilerParams(
        dimension_semantics=("parallel",),
        vmem_limit_bytes=_vmem_limit_bytes(tb, D, itemsize, n_streamed),
    )

    if lane_dense:
        # Hoisted ones operand for the MXU row-reduction (constant index_map =>
        # DMA'd once per core, stays VMEM-resident; not rebuilt every grid step).
        ones = jnp.ones((8, D - 1), jnp.float32)
        out = pl.pallas_call(
            _rosenbrock_lane_kernel,
            out_shape=jax.ShapeDtypeStruct((1, b_pad), jnp.float32),
            grid=(num_tiles,),
            in_specs=[
                pl.BlockSpec((8, D - 1), lambda i: (0, 0)),
                pl.BlockSpec((tb, D), lambda i: (i, 0)),
                xopt_spec,
            ],
            out_specs=pl.BlockSpec((1, tb), lambda i: (0, i)),
            compiler_params=compiler_params,
            cost_estimate=cost,
        )(ones, x, x_opt)
        return out[0, :B].reshape(B, 1)

    # Huge-D regime: sub-128-row tiles, (tb, 1) column output (output bytes are a
    # negligible fraction of traffic here, so masked stores are fine).
    out = pl.pallas_call(
        _rosenbrock_col_kernel,
        out_shape=jax.ShapeDtypeStruct((b_pad, 1), jnp.float32),
        grid=(num_tiles,),
        in_specs=[
            pl.BlockSpec((tb, D), lambda i: (i, 0)),
            xopt_spec,
        ],
        out_specs=pl.BlockSpec((tb, 1), lambda i: (i, 0)),
        compiler_params=compiler_params,
        cost_estimate=cost,
    )(x, x_opt)
    return out[:B]


def rosenbrock_ref(x, x_opt):
    z = (x - x_opt).astype(jnp.float32)
    zh, zt = z[:, :-1], z[:, 1:]
    return (jnp.sum(100.0 * (zh ** 2 - zt) ** 2 + (zh - 1.0) ** 2,
                    axis=1, keepdims=True) - 1.0)


if __name__ == "__main__":
    lower, upper = -2.0, 2.0              # config['lower'] / config['upper'] analogue
    key = jax.random.PRNGKey(0)
    ks = jax.random.split(key, 8)

    def rand(k, shape):
        return jax.random.uniform(k, shape, jnp.float32, lower, upper)

    # Case 1: module-sized tiny problem (single tile, lane-dense output).
    B, D = 8, 32
    x_opt = rand(ks[0], (B, D))
    x = rand(ks[1], (B, D))
    out = rosenbrock_pallas(x, x_opt)
    jax.block_until_ready(out)
    ref = rosenbrock_ref(x, x_opt)
    assert out.shape == (B, 1)
    assert jnp.allclose(out, ref, rtol=1e-5, atol=1e-2), (out, ref)

    # Case 2: multi-tile lane-dense grid + batch-padding path.
    B2, D2 = 200, 64
    x_opt2 = rand(ks[2], (B2, D2))
    x2 = rand(ks[3], (B2, D2))
    out2 = rosenbrock_pallas(x2, x_opt2, block_rows=128)
    jax.block_until_ready(out2)
    ref2 = rosenbrock_ref(x2, x_opt2)
    assert out2.shape == (B2, 1)
    assert jnp.allclose(out2, ref2, rtol=1e-5, atol=1e-2), (out2, ref2)

    # Case 3: shared optimum -> (1, D) x_opt kept VMEM-resident (halves HBM reads).
    B3, D3 = 64, 48
    x_opt3 = rand(ks[4], (1, D3))
    x3 = rand(ks[5], (B3, D3))
    out3 = rosenbrock_pallas(x3, x_opt3)
    jax.block_until_ready(out3)
    ref3 = rosenbrock_ref(x3, x_opt3)
    assert out3.shape == (B3, 1)
    assert jnp.allclose(out3, ref3, rtol=1e-5, atol=1e-2), (out3, ref3)

    # Case 4: huge-D style regime exercised at small scale (sub-128-row tiles,
    # column-output kernel path).
    B4, D4 = 32, 40
    x_opt4 = rand(ks[6], (B4, D4))
    x4 = rand(ks[7], (B4, D4))
    out4 = rosenbrock_pallas(x4, x_opt4, block_rows=8)
    jax.block_until_ready(out4)
    ref4 = rosenbrock_ref(x4, x_opt4)
    assert out4.shape == (B4, 1)
    assert jnp.allclose(out4, ref4, rtol=1e-5, atol=1e-2), (out4, ref4)

    print("KERNEL_OK")
</pallas_src>

<mosaic_0001>
module attributes {stable_mosaic.version = 11 : i64} {
  func.func @_rosenbrock_lane_kernel(%arg0: i32, %arg1: memref<8x31xf32, #tpu.memory_space<vmem>>, %arg2: memref<8x32xf32, #tpu.memory_space<vmem>>, %arg3: memref<8x32xf32, #tpu.memory_space<vmem>>, %arg4: memref<1x8xf32, #tpu.memory_space<vmem>>) attributes {dimension_semantics = [#tpu.dimension_semantics<parallel>], iteration_bounds = array<i64: 1>, scalar_prefetch = 0 : i64, scratch_operands = 0 : i64, tpu.core_type = #tpu.core_type<tc>, window_params = [{pipeline_mode = #tpu.pipeline_mode<synchronous>, transform_indices = @transform_0, window_bounds = array<i64: 8, 31>}, {transform_indices = @transform_1, window_bounds = array<i64: 8, 32>}, {transform_indices = @transform_2, window_bounds = array<i64: 8, 32>}, {transform_indices = @transform_3, window_bounds = array<i64: 1, 8>}]} {
    %c0 = arith.constant 0 : index
    %c0_0 = arith.constant 0 : index
    %0 = vector.load %arg2[%c0, %c0_0] : memref<8x32xf32, #tpu.memory_space<vmem>>, vector<8x32xf32>
    %c0_1 = arith.constant 0 : index
    %c0_2 = arith.constant 0 : index
    %1 = vector.load %arg3[%c0_1, %c0_2] : memref<8x32xf32, #tpu.memory_space<vmem>>, vector<8x32xf32>
    %2 = arith.subf %0, %1 : vector<8x32xf32>
    %3 = vector.extract_strided_slice %2 {offsets = [0, 0], sizes = [8, 31], strides = [1, 1]} : vector<8x32xf32> to vector<8x31xf32>
    %4 = vector.extract_strided_slice %2 {offsets = [0, 1], sizes = [8, 31], strides = [1, 1]} : vector<8x32xf32> to vector<8x31xf32>
    %5 = arith.mulf %3, %3 : vector<8x31xf32>
    %6 = arith.subf %5, %4 : vector<8x31xf32>
    %7 = arith.mulf %6, %6 : vector<8x31xf32>
    %cst = arith.constant 1.000000e+02 : f32
    %8 = vector.broadcast %cst : f32 to vector<8x31xf32>
    %9 = arith.mulf %8, %7 : vector<8x31xf32>
    %cst_3 = arith.constant 1.000000e+00 : f32
    %10 = vector.broadcast %cst_3 : f32 to vector<8x31xf32>
    %11 = arith.subf %3, %10 : vector<8x31xf32>
    %12 = arith.mulf %11, %11 : vector<8x31xf32>
    %13 = arith.addf %9, %12 : vector<8x31xf32>
    %c0_4 = arith.constant 0 : index
    %c0_5 = arith.constant 0 : index
    %14 = vector.load %arg1[%c0_4, %c0_5] : memref<8x31xf32, #tpu.memory_space<vmem>>, vector<8x31xf32>
    %cst_6 = arith.constant dense<0.000000e+00> : vector<8x8xf32>
    %15 = tpu.matmul %14, %13, %cst_6 {dimension_numbers = #tpu.dot_dimension_numbers<[1], [1], [0], [0], [0, 0, 1, 0], [], []>, precision = #tpu.contract_precision<fp32>} : vector<8x31xf32>, vector<8x31xf32>, vector<8x8xf32> -> vector<8x8xf32>
    %16 = vector.extract_strided_slice %15 {offsets = [0, 0], sizes = [1, 8], strides = [1, 1]} : vector<8x8xf32> to vector<1x8xf32>
    %cst_7 = arith.constant 1.000000e+00 : f32
    %17 = vector.broadcast %cst_7 : f32 to vector<1x8xf32>
    %18 = arith.subf %16, %17 : vector<1x8xf32>
    %c0_8 = arith.constant 0 : index
    %c0_9 = arith.constant 0 : index
    %19 = vector.load %arg4[%c0_8, %c0_9] : memref<1x8xf32, #tpu.memory_space<vmem>>, vector<1x8xf32>
    tpu.vector_store %arg4[%c0_8, %c0_9], %18 {strides = array<i32>} : memref<1x8xf32, #tpu.memory_space<vmem>>, vector<1x8xf32>,
    return
  }
  func.func @transform_0(%arg0: i32) -> (i32, i32) {
    %c0_i32 = arith.constant 0 : i32
    %c0_i32_0 = arith.constant 0 : i32
    %c0_i32_1 = arith.constant 0 : i32
    return %c0_i32, %c0_i32_0 : i32, i32
  }
  func.func @transform_1(%arg0: i32) -> (i32, i32) {
    %c0_i32 = arith.constant 0 : i32
    %c0_i32_0 = arith.constant 0 : i32
    return %arg0, %c0_i32 : i32, i32
  }
  func.func @transform_2(%arg0: i32) -> (i32, i32) {
    %c0_i32 = arith.constant 0 : i32
    %c0_i32_0 = arith.constant 0 : i32
    return %arg0, %c0_i32 : i32, i32
  }
  func.func @transform_3(%arg0: i32) -> (i32, i32) {
    %c0_i32 = arith.constant 0 : i32
    %c0_i32_0 = arith.constant 0 : i32
    return %c0_i32, %arg0 : i32, i32
  }
}

</mosaic_0001>

<llo_original>
// kernel: tpu_custom_call.1
$region0: #{tpu_custom_call.1}
  #allocation0 [shape = 'u32[]', space=smem, size = 0x4, offset = 0x4, fixed_abs, tag = 'smem constant byte address 0x4 - core index']
  #allocation1 [shape = 'u32[144,128]{1,0:T(1,128)}', space=vmem, size = 0x12000, scoped, tag = 'internal scratch']
  %s0 = inlined_call_operand.hbm [shape: f32[8,31], index: 0, kind: input, shape index: {}]
  %s1 = inlined_call_operand.hbm [shape: f32[8,32], index: 1, kind: input, shape index: {}]
  %s2 = inlined_call_operand.hbm [shape: f32[8,32], index: 2, kind: input, shape index: {}]
  %s3 = inlined_call_operand.hbm [shape: f32[1,8], index: 3, kind: output, shape index: {}]
  %s4 = sld [smem:[#allocation0]]
  $region34: #{tpu_custom_call.1} parent=0
    _
  %s6 = ssub.s32 1, %s4
  %s7 = scalar_select 0, %s6, %s4
  $region1: #{tpu_custom_call.1} parent=0
    #allocation2 [shape = 'u8[4096]{0}', space=vmem, size = 0x1000, scoped, tag = 'input window, operand 0, single buffered']
    #allocation3 [shape = 's32[1]{0}', space=sflag, size = 0x4, scoped, tag = 'scoped memory for tpu_custom_call.1']
    #allocation4 [shape = 's32[1]{0}', space=sflag, size = 0x4, scoped, tag = 'scoped memory for tpu_custom_call.1']
    #allocation5 [shape = 'u8[4096]{0}', space=vmem, size = 0x1000, scoped, tag = 'input window, operand 1, single buffered']
    #allocation6 [shape = 's32[1]{0}', space=sflag, size = 0x4, scoped, tag = 'scoped memory for tpu_custom_call.1']
    #allocation7 [shape = 'u8[4096]{0}', space=vmem, size = 0x1000, scoped, tag = 'input window, operand 2, single buffered']
    #allocation8 [shape = 'u8[512]{0}', space=vmem, size = 0x400, scoped, tag = 'output window, operand 0, single buffered']
    %8 = vsyncpa [#allocation3], 0
    %9 = vsyncpa [#allocation6], 0
    %10 = vsyncpa [#allocation4], 0
    // Predicated region
    $region2: #{tpu_custom_call.1} parent=1 // pred_check
      _
    $region3: #{tpu_custom_call.1} parent=1 // pred_check_branch
      %12 = sbr.rel (0) target = $region5
    $region4: #{tpu_custom_call.1} parent=1 // pred_region
      %s14 = ssub.s32 128, 128
      %15 = vsyncadd [#allocation3], %s14
      %s17 = sshll.u32 [#allocation2], 4
      %s18 = int_to_ptr.vmem [resolvable:$true] %s17
      %20 = dma.hbm_to_vmem [thread:$0]  %s0, 128, %s18, [#allocation3]
    $region5: #{tpu_custom_call.1} parent=1 // pred_fallthru
      _
    // Predicated region
    $region6: #{tpu_custom_call.1} parent=1 // pred_check
      _
    $region7: #{tpu_custom_call.1} parent=1 // pred_check_branch
      %22 = sbr.rel (0) target = $region9
    $region8: #{tpu_custom_call.1} parent=1 // pred_region
      %s24 = ssub.s32 128, 128
      %25 = vsyncadd [#allocation6], %s24
      %s27 = sshll.u32 [#allocation5], 4
      %s28 = int_to_ptr.vmem [resolvable:$true] %s27
      %30 = dma.hbm_to_vmem [thread:$0]  %s1, 128, %s28, [#allocation6]
    $region9: #{tpu_custom_call.1} parent=1 // pred_fallthru
      _
    // Predicated region
    $region10: #{tpu_custom_call.1} parent=1 // pred_check
      _
    $region11: #{tpu_custom_call.1} parent=1 // pred_check_branch
      %32 = sbr.rel (0) target = $region13
    $region12: #{tpu_custom_call.1} parent=1 // pred_region
      %s34 = ssub.s32 128, 128
      %35 = vsyncadd [#allocation6], %s34
      %s37 = sshll.u32 [#allocation7], 4
      %s38 = int_to_ptr.vmem [resolvable:$true] %s37
      %40 = dma.hbm_to_vmem [thread:$0]  %s2, 128, %s38, [#allocation6]
    $region13: #{tpu_custom_call.1} parent=1 // pred_fallthru
      _
    // Predicated region
    $region14: #{tpu_custom_call.1} parent=1 // pred_check
      _
    $region15: #{tpu_custom_call.1} parent=1 // pred_check_branch
      %42 = sbr.rel (0) target = $region17
    $region16: #{tpu_custom_call.1} parent=1 // pred_region
      %43 = dma.done [#allocation3], 128
    $region17: #{tpu_custom_call.1} parent=1 // pred_fallthru
      _
    // Predicated region
    $region18: #{tpu_custom_call.1} parent=1 // pred_check
      _
    $region19: #{tpu_custom_call.1} parent=1 // pred_check_branch
      %45 = sbr.rel (0) target = $region21
    $region20: #{tpu_custom_call.1} parent=1 // pred_region
      %46 = dma.done [#allocation6], 128
    $region21: #{tpu_custom_call.1} parent=1 // pred_fallthru
      _
    // Predicated region
    $region22: #{tpu_custom_call.1} parent=1 // pred_check
      _
    $region23: #{tpu_custom_call.1} parent=1 // pred_check_branch
      %48 = sbr.rel (0) target = $region25
    $region24: #{tpu_custom_call.1} parent=1 // pred_region
      %49 = dma.done [#allocation6], 128
    $region25: #{tpu_custom_call.1} parent=1 // pred_fallthru
      _
    %v50 = vld [vmem:[#allocation5] sm:$0xff]
    %v51 = vld [vmem:[#allocation7] sm:$0xff]
    %v52 = vsub.f32 %v50, %v51
    %v53 = vmul.f32 %v52, %v52
    %55 = vrot.lane.b32.xlu0 %v52, 127
    %v56 = vpop.permute.xlu0 %55
    %v58 = vsub.f32 %v53, %v56
    %v59 = vmul.f32 %v58, %v58
    %v60 = vmul.f32 %v59, 100.0
    %v61 = vsub.f32 %v52, 1.0
    %v62 = vmul.f32 %v61, %v61
    %v63 = vadd.f32 %v60, %v62
    %v64 = vld [vmem:[#allocation2] sm:$0xff]
    %vm65 = vcmask 252928
    %v67 = vsel %vm65, %v64, 0
    %v70 = vsel %vm65, %v63, 0
    %72 = vmatprep.subr.mxu0 0.0
    %v73 = vand.u32 %v70, 4294901760
    %74 = vmatpush1.xpose.msra.mxu0 %v73
    %75 = vmatprep.subr.mxu0 0.0
    %76 = vmatpush1.xpose.msra.mxu0 0.0
    %77 = vmatprep.subr.mxu0 0.0
    %78 = vmatpush1.xpose.msra.mxu0 0.0
    %79 = vmatprep.subr.mxu0 0.0
    %80 = vmatpush1.xpose.msra.mxu0 0.0
    %81 = vmatprep.subr.mxu0 0.0
    %82 = vmatpush1.xpose.msra.mxu0 0.0
    %83 = vmatprep.subr.mxu0 0.0
    %84 = vmatpush1.xpose.msra.mxu0 0.0
    %85 = vmatprep.subr.mxu0 0.0
    %86 = vmatpush1.xpose.msra.mxu0 0.0
    %87 = vmatprep.subr.mxu0 0.0
    %88 = vmatpush1.xpose.msra.mxu0 0.0
    %89 = vmatprep.subr.mxu0 0.0
    %90 = vmatpush1.xpose.msra.mxu0 0.0
    %91 = vmatprep.subr.mxu0 0.0
    %92 = vmatpush1.xpose.msra.mxu0 0.0
    %93 = vmatprep.subr.mxu0 0.0
    %94 = vmatpush1.xpose.msra.mxu0 0.0
    %95 = vmatprep.subr.mxu0 0.0
    %96 = vmatpush1.xpose.msra.mxu0 0.0
    %97 = vmatprep.subr.mxu0 0.0
    %98 = vmatpush1.xpose.msra.mxu0 0.0
    %99 = vmatprep.subr.mxu0 0.0
    %100 = vmatpush1.xpose.msra.mxu0 0.0
    %101 = vmatprep.subr.mxu0 0.0
    %102 = vmatpush1.xpose.msra.mxu0 0.0
    %103 = vmatprep.subr.mxu0 0.0
    %104 = vmatpush1.xpose.msra.mxu0 0.0
    %105 = vmatprep.subr.mxu0 0.0
    %106 = vmatpush1.xpose.msra.mxu0 0.0
    %107 = vmatprep.subr.mxu0 0.0
    %108 = vmatpush1.xpose.msra.mxu0 0.0
    %109 = vmatprep.subr.mxu0 0.0
    %110 = vmatpush1.xpose.msra.mxu0 0.0
    %111 = vmatprep.subr.mxu0 0.0
    %112 = vmatpush1.xpose.msra.mxu0 0.0
    %113 = vmatprep.subr.mxu0 0.0
    %114 = vmatpush1.xpose.msra.mxu0 0.0
    %115 = vmatprep.subr.mxu0 0.0
    %116 = vmatpush1.xpose.msra.mxu0 0.0
    %117 = vmatprep.subr.mxu0 0.0
    %118 = vmatpush1.xpose.msra.mxu0 0.0
    %119 = vmatprep.subr.mxu0 0.0
    %120 = vmatpush1.xpose.msra.mxu0 0.0
    %121 = vmatprep.subr.mxu0 0.0
    %122 = vmatpush1.xpose.msra.mxu0 0.0
    %123 = vmatprep.subr.mxu0 0.0
    %124 = vmatpush1.xpose.msra.mxu0 0.0
    %125 = vmatprep.subr.mxu0 0.0
    %126 = vmatpush1.xpose.msra.mxu0 0.0
    %127 = vmatprep.subr.mxu0 0.0
    %128 = vmatpush1.xpose.msra.mxu0 0.0
    %129 = vmatprep.subr.mxu0 0.0
    %130 = vmatpush1.xpose.msra.mxu0 0.0
    %131 = vmatprep.subr.mxu0 0.0
    %132 = vmatpush1.xpose.msra.mxu0 0.0
    %133 = vmatprep.subr.mxu0 0.0
    %134 = vmatpush1.xpose.msra.mxu0 0.0
    %135 = vmatprep.subr.mxu0 0.0
    %136 = vmatpush1.xpose.msra.mxu0 0.0
    %137 = vmatprep.mubr.f32.mxu0 0.0
    %v138 = vand.u32 %v67, 4294901760
    %v139 = vsub.f32 %v67, %v138
    %v140 = vand.u32 %v139, 4294901760
    %v141 = vsub.f32 %v139, %v140
    %v142 = vand.u32 %v141, 4294901760
    %143 = vmatmul.mubr.f32.gmra.mrb[0].mxu0 %v142
    %v144 = vpop.f32.mrb[0].mxu0
    %v145 = vadd.f32 0.0, %v144
    %v146 = vpop.f32.mrb[0].mxu0
    %147 = vdwg.mxu0
    %148 = vmatprep.subr.mxu0 0.0
    %v149 = vand.u32 %v70, 4294901760
    %v150 = vsub.f32 %v70, %v149
    %v151 = vand.u32 %v150, 4294901760
    %v152 = vsub.f32 %v150, %v151
    %v153 = vand.u32 %v152, 4294901760
    %154 = vmatpush1.xpose.msra.mxu0 %v153
    %155 = vmatprep.subr.mxu0 0.0
    %156 = vmatpush1.xpose.msra.mxu0 0.0
    %157 = vmatprep.subr.mxu0 0.0
    %158 = vmatpush1.xpose.msra.mxu0 0.0
    %159 = vmatprep.subr.mxu0 0.0
    %160 = vmatpush1.xpose.msra.mxu0 0.0
    %161 = vmatprep.subr.mxu0 0.0
    %162 = vmatpush1.xpose.msra.mxu0 0.0
    %163 = vmatprep.subr.mxu0 0.0
    %164 = vmatpush1.xpose.msra.mxu0 0.0
    %165 = vmatprep.subr.mxu0 0.0
    %166 = vmatpush1.xpose.msra.mxu0 0.0
    %167 = vmatprep.subr.mxu0 0.0
    %168 = vmatpush1.xpose.msra.mxu0 0.0
    %169 = vmatprep.subr.mxu0 0.0
    %170 = vmatpush1.xpose.msra.mxu0 0.0
    %171 = vmatprep.subr.mxu0 0.0
    %172 = vmatpush1.xpose.msra.mxu0 0.0
    %173 = vmatprep.subr.mxu0 0.0
    %174 = vmatpush1.xpose.msra.mxu0 0.0
    %175 = vmatprep.subr.mxu0 0.0
    %176 = vmatpush1.xpose.msra.mxu0 0.0
    %177 = vmatprep.subr.mxu0 0.0
    %178 = vmatpush1.xpose.msra.mxu0 0.0
    %179 = vmatprep.subr.mxu0 0.0
    %180 = vmatpush1.xpose.msra.mxu0 0.0
    %181 = vmatprep.subr.mxu0 0.0
    %182 = vmatpush1.xpose.msra.mxu0 0.0
    %183 = vmatprep.subr.mxu0 0.0
    %184 = vmatpush1.xpose.msra.mxu0 0.0
    %185 = vmatprep.subr.mxu0 0.0
    %186 = vmatpush1.xpose.msra.mxu0 0.0
    %187 = vmatprep.subr.mxu0 0.0
    %188 = vmatpush1.xpose.msra.mxu0 0.0
    %189 = vmatprep.subr.mxu0 0.0
    %190 = vmatpush1.xpose.msra.mxu0 0.0
    %191 = vmatprep.subr.mxu0 0.0
    %192 = vmatpush1.xpose.msra.mxu0 0.0
    %193 = vmatprep.subr.mxu0 0.0
    %194 = vmatpush1.xpose.msra.mxu0 0.0
    %195 = vmatprep.subr.mxu0 0.0
    %196 = vmatpush1.xpose.msra.mxu0 0.0
    %197 = vmatprep.subr.mxu0 0.0
    %198 = vmatpush1.xpose.msra.mxu0 0.0
    %199 = vmatprep.subr.mxu0 0.0
    %200 = vmatpush1.xpose.msra.mxu0 0.0
    %201 = vmatprep.subr.mxu0 0.0
    %202 = vmatpush1.xpose.msra.mxu0 0.0
    %203 = vmatprep.subr.mxu0 0.0
    %204 = vmatpush1.xpose.msra.mxu0 0.0
    %205 = vmatprep.subr.mxu0 0.0
    %206 = vmatpush1.xpose.msra.mxu0 0.0
    %207 = vmatprep.subr.mxu0 0.0
    %208 = vmatpush1.xpose.msra.mxu0 0.0
    %209 = vmatprep.subr.mxu0 0.0
    %210 = vmatpush1.xpose.msra.mxu0 0.0
    %211 = vmatprep.subr.mxu0 0.0
    %212 = vmatpush1.xpose.msra.mxu0 0.0
    %213 = vmatprep.subr.mxu0 0.0
    %214 = vmatpush1.xpose.msra.mxu0 0.0
    %215 = vmatprep.subr.mxu0 0.0
    %216 = vmatpush1.xpose.msra.mxu0 0.0
    %217 = vmatprep.mubr.f32.mxu0 0.0
    %v218 = vand.u32 %v67, 4294901760
    %219 = vmatmul.mubr.f32.gmra.mrb[0].mxu0 %v218
    %v220 = vpop.f32.mrb[0].mxu0
    %v221 = vadd.f32 %v145, %v220
    %v222 = vpop.f32.mrb[0].mxu0
    %223 = vdwg.mxu0
    %224 = vmatprep.subr.mxu0 0.0
    %v225 = vand.u32 %v70, 4294901760
    %v226 = vsub.f32 %v70, %v225
    %227 = vmatpush1.xpose.msra.mxu0 %v226
    %228 = vmatprep.subr.mxu0 0.0
    %229 = vmatpush1.xpose.msra.mxu0 0.0
    %230 = vmatprep.subr.mxu0 0.0
    %231 = vmatpush1.xpose.msra.mxu0 0.0
    %232 = vmatprep.subr.mxu0 0.0
    %233 = vmatpush1.xpose.msra.mxu0 0.0
    %234 = vmatprep.subr.mxu0 0.0
    %235 = vmatpush1.xpose.msra.mxu0 0.0
    %236 = vmatprep.subr.mxu0 0.0
    %237 = vmatpush1.xpose.msra.mxu0 0.0
    %238 = vmatprep.subr.mxu0 0.0
    %239 = vmatpush1.xpose.msra.mxu0 0.0
    %240 = vmatprep.subr.mxu0 0.0
    %241 = vmatpush1.xpose.msra.mxu0 0.0
    %242 = vmatprep.subr.mxu0 0.0
    %243 = vmatpush1.xpose.msra.mxu0 0.0
    %244 = vmatprep.subr.mxu0 0.0
    %245 = vmatpush1.xpose.msra.mxu0 0.0
    %246 = vmatprep.subr.mxu0 0.0
    %247 = vmatpush1.xpose.msra.mxu0 0.0
    %248 = vmatprep.subr.mxu0 0.0
    %249 = vmatpush1.xpose.msra.mxu0 0.0
    %250 = vmatprep.subr.mxu0 0.0
    %251 = vmatpush1.xpose.msra.mxu0 0.0
    %252 = vmatprep.subr.mxu0 0.0
    %253 = vmatpush1.xpose.msra.mxu0 0.0
    %254 = vmatprep.subr.mxu0 0.0
    %255 = vmatpush1.xpose.msra.mxu0 0.0
    %256 = vmatprep.subr.mxu0 0.0
    %257 = vmatpush1.xpose.msra.mxu0 0.0
    %258 = vmatprep.subr.mxu0 0.0
    %259 = vmatpush1.xpose.msra.mxu0 0.0
    %260 = vmatprep.subr.mxu0 0.0
    %261 = vmatpush1.xpose.msra.mxu0 0.0
    %262 = vmatprep.subr.mxu0 0.0
    %263 = vmatpush1.xpose.msra.mxu0 0.0
    %264 = vmatprep.subr.mxu0 0.0
    %265 = vmatpush1.xpose.msra.mxu0 0.0
    %266 = vmatprep.subr.mxu0 0.0
    %267 = vmatpush1.xpose.msra.mxu0 0.0
    %268 = vmatprep.subr.mxu0 0.0
    %269 = vmatpush1.xpose.msra.mxu0 0.0
    %270 = vmatprep.subr.mxu0 0.0
    %271 = vmatpush1.xpose.msra.mxu0 0.0
    %272 = vmatprep.subr.mxu0 0.0
    %273 = vmatpush1.xpose.msra.mxu0 0.0
    %274 = vmatprep.subr.mxu0 0.0
    %275 = vmatpush1.xpose.msra.mxu0 0.0
    %276 = vmatprep.subr.mxu0 0.0
    %277 = vmatpush1.xpose.msra.mxu0 0.0
    %278 = vmatprep.subr.mxu0 0.0
    %279 = vmatpush1.xpose.msra.mxu0 0.0
    %280 = vmatprep.subr.mxu0 0.0
    %281 = vmatpush1.xpose.msra.mxu0 0.0
    %282 = vmatprep.subr.mxu0 0.0
    %283 = vmatpush1.xpose.msra.mxu0 0.0
    %284 = vmatprep.subr.mxu0 0.0
    %285 = vmatpush1.xpose.msra.mxu0 0.0
    %286 = vmatprep.subr.mxu0 0.0
    %287 = vmatpush1.xpose.msra.mxu0 0.0
    %288 = vmatprep.subr.mxu0 0.0
    %289 = vmatpush1.xpose.msra.mxu0 0.0
    %290 = vmatprep.mubr.f32.mxu0 0.0
    %v291 = vand.u32 %v67, 4294901760
    %v292 = vsub.f32 %v67, %v291
    %293 = vmatmul.mubr.f32.gmra.mrb[0].mxu0 %v292
    %v294 = vpop.f32.mrb[0].mxu0
    %v295 = vadd.f32 %v221, %v294
    %v296 = vpop.f32.mrb[0].mxu0
    %297 = vdwg.mxu0
    %298 = vmatprep.subr.mxu0 0.0
    %v299 = vand.u32 %v70, 4294901760
    %300 = vmatpush1.xpose.msra.mxu0 %v299
    %301 = vmatprep.subr.mxu0 0.0
    %302 = vmatpush1.xpose.msra.mxu0 0.0
    %303 = vmatprep.subr.mxu0 0.0
    %304 = vmatpush1.xpose.msra.mxu0 0.0
    %305 = vmatprep.subr.mxu0 0.0
    %306 = vmatpush1.xpose.msra.mxu0 0.0
    %307 = vmatprep.subr.mxu0 0.0
    %308 = vmatpush1.xpose.msra.mxu0 0.0
    %309 = vmatprep.subr.mxu0 0.0
    %310 = vmatpush1.xpose.msra.mxu0 0.0
    %311 = vmatprep.subr.mxu0 0.0
    %312 = vmatpush1.xpose.msra.mxu0 0.0
    %313 = vmatprep.subr.mxu0 0.0
    %314 = vmatpush1.xpose.msra.mxu0 0.0
    %315 = vmatprep.subr.mxu0 0.0
    %316 = vmatpush1.xpose.msra.mxu0 0.0
    %317 = vmatprep.subr.mxu0 0.0
    %318 = vmatpush1.xpose.msra.mxu0 0.0
    %319 = vmatprep.subr.mxu0 0.0
    %320 = vmatpush1.xpose.msra.mxu0 0.0
    %321 = vmatprep.subr.mxu0 0.0
    %322 = vmatpush1.xpose.msra.mxu0 0.0
    %323 = vmatprep.subr.mxu0 0.0
    %324 = vmatpush1.xpose.msra.mxu0 0.0
    %325 = vmatprep.subr.mxu0 0.0
    %326 = vmatpush1.xpose.msra.mxu0 0.0
    %327 = vmatprep.subr.mxu0 0.0
    %328 = vmatpush1.xpose.msra.mxu0 0.0
    %329 = vmatprep.subr.mxu0 0.0
    %330 = vmatpush1.xpose.msra.mxu0 0.0
    %331 = vmatprep.subr.mxu0 0.0
    %332 = vmatpush1.xpose.msra.mxu0 0.0
    %333 = vmatprep.subr.mxu0 0.0
    %334 = vmatpush1.xpose.msra.mxu0 0.0
    %335 = vmatprep.subr.mxu0 0.0
    %336 = vmatpush1.xpose.msra.mxu0 0.0
    %337 = vmatprep.subr.mxu0 0.0
    %338 = vmatpush1.xpose.msra.mxu0 0.0
    %339 = vmatprep.subr.mxu0 0.0
    %340 = vmatpush1.xpose.msra.mxu0 0.0
    %341 = vmatprep.subr.mxu0 0.0
    %342 = vmatpush1.xpose.msra.mxu0 0.0
    %343 = vmatprep.subr.mxu0 0.0
    %344 = vmatpush1.xpose.msra.mxu0 0.0
    %345 = vmatprep.subr.mxu0 0.0
    %346 = vmatpush1.xpose.msra.mxu0 0.0
    %347 = vmatprep.subr.mxu0 0.0
    %348 = vmatpush1.xpose.msra.mxu0 0.0
    %349 = vmatprep.subr.mxu0 0.0
    %350 = vmatpush1.xpose.msra.mxu0 0.0
    %351 = vmatprep.subr.mxu0 0.0
    %352 = vmatpush1.xpose.msra.mxu0 0.0
    %353 = vmatprep.subr.mxu0 0.0
    %354 = vmatpush1.xpose.msra.mxu0 0.0
    %355 = vmatprep.subr.mxu0 0.0
    %356 = vmatpush1.xpose.msra.mxu0 0.0
    %357 = vmatprep.subr.mxu0 0.0
    %358 = vmatpush1.xpose.msra.mxu0 0.0
    %359 = vmatprep.subr.mxu0 0.0
    %360 = vmatpush1.xpose.msra.mxu0 0.0
    %361 = vmatprep.subr.mxu0 0.0
    %362 = vmatpush1.xpose.msra.mxu0 0.0
    %363 = vmatprep.mubr.f32.mxu0 0.0
    %v364 = vand.u32 %v67, 4294901760
    %v365 = vsub.f32 %v67, %v364
    %v366 = vand.u32 %v365, 4294901760
    %367 = vmatmul.mubr.f32.gmra.mrb[0].mxu0 %v366
    %v368 = vpop.f32.mrb[0].mxu0
    %v369 = vadd.f32 %v295, %v368
    %v370 = vpop.f32.mrb[0].mxu0
    %371 = vdwg.mxu0
    %372 = vmatprep.subr.mxu0 0.0
    %v373 = vand.u32 %v70, 4294901760
    %v374 = vsub.f32 %v70, %v373
    %v375 = vand.u32 %v374, 4294901760
    %376 = vmatpush1.xpose.msra.mxu0 %v375
    %377 = vmatprep.subr.mxu0 0.0
    %378 = vmatpush1.xpose.msra.mxu0 0.0
    %379 = vmatprep.subr.mxu0 0.0
    %380 = vmatpush1.xpose.msra.mxu0 0.0
    %381 = vmatprep.subr.mxu0 0.0
    %382 = vmatpush1.xpose.msra.mxu0 0.0
    %383 = vmatprep.subr.mxu0 0.0
    %384 = vmatpush1.xpose.msra.mxu0 0.0
    %385 = vmatprep.subr.mxu0 0.0
    %386 = vmatpush1.xpose.msra.mxu0 0.0
    %387 = vmatprep.subr.mxu0 0.0
    %388 = vmatpush1.xpose.msra.mxu0 0.0
    %389 = vmatprep.subr.mxu0 0.0
    %390 = vmatpush1.xpose.msra.mxu0 0.0
    %391 = vmatprep.subr.mxu0 0.0
    %392 = vmatpush1.xpose.msra.mxu0 0.0
    %393 = vmatprep.subr.mxu0 0.0
    %394 = vmatpush1.xpose.msra.mxu0 0.0
    %395 = vmatprep.subr.mxu0 0.0
    %396 = vmatpush1.xpose.msra.mxu0 0.0
    %397 = vmatprep.subr.mxu0 0.0
    %398 = vmatpush1.xpose.msra.mxu0 0.0
    %399 = vmatprep.subr.mxu0 0.0
    %400 = vmatpush1.xpose.msra.mxu0 0.0
    %401 = vmatprep.subr.mxu0 0.0
    %402 = vmatpush1.xpose.msra.mxu0 0.0
    %403 = vmatprep.subr.mxu0 0.0
    %404 = vmatpush1.xpose.msra.mxu0 0.0
    %405 = vmatprep.subr.mxu0 0.0
    %406 = vmatpush1.xpose.msra.mxu0 0.0
    %407 = vmatprep.subr.mxu0 0.0
    %408 = vmatpush1.xpose.msra.mxu0 0.0
    %409 = vmatprep.subr.mxu0 0.0
    %410 = vmatpush1.xpose.msra.mxu0 0.0
    %411 = vmatprep.subr.mxu0 0.0
    %412 = vmatpush1.xpose.msra.mxu0 0.0
    %413 = vmatprep.subr.mxu0 0.0
    %414 = vmatpush1.xpose.msra.mxu0 0.0
    %415 = vmatprep.subr.mxu0 0.0
    %416 = vmatpush1.xpose.msra.mxu0 0.0
    %417 = vmatprep.subr.mxu0 0.0
    %418 = vmatpush1.xpose.msra.mxu0 0.0
    %419 = vmatprep.subr.mxu0 0.0
    %420 = vmatpush1.xpose.msra.mxu0 0.0
    %421 = vmatprep.subr.mxu0 0.0
    %422 = vmatpush1.xpose.msra.mxu0 0.0
    %423 = vmatprep.subr.mxu0 0.0
    %424 = vmatpush1.xpose.msra.mxu0 0.0
    %425 = vmatprep.subr.mxu0 0.0
    %426 = vmatpush1.xpose.msra.mxu0 0.0
    %427 = vmatprep.subr.mxu0 0.0
    %428 = vmatpush1.xpose.msra.mxu0 0.0
    %429 = vmatprep.subr.mxu0 0.0
    %430 = vmatpush1.xpose.msra.mxu0 0.0
    %431 = vmatprep.subr.mxu0 0.0
    %432 = vmatpush1.xpose.msra.mxu0 0.0
    %433 = vmatprep.subr.mxu0 0.0
    %434 = vmatpush1.xpose.msra.mxu0 0.0
    %435 = vmatprep.subr.mxu0 0.0
    %436 = vmatpush1.xpose.msra.mxu0 0.0
    %437 = vmatprep.subr.mxu0 0.0
    %438 = vmatpush1.xpose.msra.mxu0 0.0
    %439 = vmatprep.mubr.f32.mxu0 0.0
    %v440 = vand.u32 %v67, 4294901760
    %441 = vmatmul.mubr.f32.gmra.mrb[0].mxu0 %v440
    %v442 = vpop.f32.mrb[0].mxu0
    %v443 = vadd.f32 %v369, %v442
    %v444 = vpop.f32.mrb[0].mxu0
    %445 = vdwg.mxu0
    %446 = vmatprep.subr.mxu0 0.0
    %v447 = vand.u32 %v70, 4294901760
    %448 = vmatpush1.xpose.msra.mxu0 %v447
    %449 = vmatprep.subr.mxu0 0.0
    %450 = vmatpush1.xpose.msra.mxu0 0.0
    %451 = vmatprep.subr.mxu0 0.0
    %452 = vmatpush1.xpose.msra.mxu0 0.0
    %453 = vmatprep.subr.mxu0 0.0
    %454 = vmatpush1.xpose.msra.mxu0 0.0
    %455 = vmatprep.subr.mxu0 0.0
    %456 = vmatpush1.xpose.msra.mxu0 0.0
    %457 = vmatprep.subr.mxu0 0.0
    %458 = vmatpush1.xpose.msra.mxu0 0.0
    %459 = vmatprep.subr.mxu0 0.0
    %460 = vmatpush1.xpose.msra.mxu0 0.0
    %461 = vmatprep.subr.mxu0 0.0
    %462 = vmatpush1.xpose.msra.mxu0 0.0
    %463 = vmatprep.subr.mxu0 0.0
    %464 = vmatpush1.xpose.msra.mxu0 0.0
    %465 = vmatprep.subr.mxu0 0.0
    %466 = vmatpush1.xpose.msra.mxu0 0.0
    %467 = vmatprep.subr.mxu0 0.0
    %468 = vmatpush1.xpose.msra.mxu0 0.0
    %469 = vmatprep.subr.mxu0 0.0
    %470 = vmatpush1.xpose.msra.mxu0 0.0
    %471 = vmatprep.subr.mxu0 0.0
    %472 = vmatpush1.xpose.msra.mxu0 0.0
    %473 = vmatprep.subr.mxu0 0.0
    %474 = vmatpush1.xpose.msra.mxu0 0.0
    %475 = vmatprep.subr.mxu0 0.0
    %476 = vmatpush1.xpose.msra.mxu0 0.0
    %477 = vmatprep.subr.mxu0 0.0
    %478 = vmatpush1.xpose.msra.mxu0 0.0
    %479 = vmatprep.subr.mxu0 0.0
    %480 = vmatpush1.xpose.msra.mxu0 0.0
    %481 = vmatprep.subr.mxu0 0.0
    %482 = vmatpush1.xpose.msra.mxu0 0.0
    %483 = vmatprep.subr.mxu0 0.0
    %484 = vmatpush1.xpose.msra.mxu0 0.0
    %485 = vmatprep.subr.mxu0 0.0
    %486 = vmatpush1.xpose.msra.mxu0 0.0
    %487 = vmatprep.subr.mxu0 0.0
    %488 = vmatpush1.xpose.msra.mxu0 0.0
    %489 = vmatprep.subr.mxu0 0.0
    %490 = vmatpush1.xpose.msra.mxu0 0.0
    %491 = vmatprep.subr.mxu0 0.0
    %492 = vmatpush1.xpose.msra.mxu0 0.0
    %493 = vmatprep.subr.mxu0 0.0
    %494 = vmatpush1.xpose.msra.mxu0 0.0
    %495 = vmatprep.subr.mxu0 0.0
    %496 = vmatpush1.xpose.msra.mxu0 0.0
    %497 = vmatprep.subr.mxu0 0.0
    %498 = vmatpush1.xpose.msra.mxu0 0.0
    %499 = vmatprep.subr.mxu0 0.0
    %500 = vmatpush1.xpose.msra.mxu0 0.0
    %501 = vmatprep.subr.mxu0 0.0
    %502 = vmatpush1.xpose.msra.mxu0 0.0
    %503 = vmatprep.subr.mxu0 0.0
    %504 = vmatpush1.xpose.msra.mxu0 0.0
    %505 = vmatprep.subr.mxu0 0.0
    %506 = vmatpush1.xpose.msra.mxu0 0.0
    %507 = vmatprep.subr.mxu0 0.0
    %508 = vmatpush1.xpose.msra.mxu0 0.0
    %509 = vmatprep.subr.mxu0 0.0
    %510 = vmatpush1.xpose.msra.mxu0 0.0
    %511 = vmatprep.mubr.f32.mxu0 0.0
    %v512 = vand.u32 %v67, 4294901760
    %513 = vmatmul.mubr.f32.gmra.mrb[0].mxu0 %v512
    %v514 = vpop.f32.mrb[0].mxu0
    %v515 = vadd.f32 %v443, %v514
    %v516 = vpop.f32.mrb[0].mxu0
    %517 = vdwg.mxu0
    %v518 = vsub.f32 %v515, 1.0
    %vm519 = vcmask 57344
    %520 = vst.msk [vmem:[#allocation8] sm:$0x1] %vm519, %v518
    // Predicated region
    $region26: #{tpu_custom_call.1} parent=1 // pred_check
      _
    $region27: #{tpu_custom_call.1} parent=1 // pred_check_branch
      %522 = sbr.rel (0) target = $region29
    $region28: #{tpu_custom_call.1} parent=1 // pred_region
      %s524 = ssub.s32 16, 16
      %525 = vsyncadd [#allocation4], %s524
      %s527 = sshll.u32 [#allocation8], 4
      %s528 = int_to_ptr.vmem [resolvable:$true] %s527
      %530 = dma.vmem_to_hbm [thread:$0]  %s528, 16, %s3, [#allocation4]
    $region29: #{tpu_custom_call.1} parent=1 // pred_fallthru
      _
    // Predicated region
    $region30: #{tpu_custom_call.1} parent=1 // pred_check
      _
    $region31: #{tpu_custom_call.1} parent=1 // pred_check_branch
      %532 = sbr.rel (0) target = $region33
    $region32: #{tpu_custom_call.1} parent=1 // pred_region
      %533 = dma.done [#allocation4], 16
    $region33: #{tpu_custom_call.1} parent=1 // pred_fallthru
      _
    %534 = vsyncpa [#allocation3], 1
    %535 = vsyncpa [#allocation6], 1
    %536 = vsyncpa [#allocation4], 1

</llo_original>
